<compile_context>
chip_gen: v5e
topology: v5e:2x2
jax: 0.10.0
libtpu: 0.0.40
codegen_flags: <defaults>
</compile_context>

<pallas_src>
import functools

import jax
import jax.numpy as jnp
from jax.experimental import pallas as pl
from jax.experimental.pallas import tpu as pltpu


def _round_up(x, m):
    return (x + m - 1) // m * m


def _pad2(arr, r, c, dtype):
    out = jnp.zeros((r, c), dtype)
    return out.at[: arr.shape[0], : arr.shape[1]].set(arr.astype(dtype))


def _vmem_capacity_bytes():
    try:
        return int(pltpu.get_tpu_info().vmem_capacity_bytes)
    except Exception:  # fall back to the smallest per-TC capacity (v7x)
        return 64 * 1024 * 1024


# ----------------------------------------------------------------------------
# Fused Pallas kernel: conv1 -> depth x GResBlock -> conv2, all VMEM-resident.
# ----------------------------------------------------------------------------
def _gbottleneck_kernel(a_ref, x_ref, w1_ref, b1_ref, wb_ref, bb_ref,
                        w2_ref, b2_ref, h_ref, c_ref, *, depth):
    md = a_ref.dtype                       # matmul operand dtype (bf16 or f32)
    a = a_ref[...]                         # [Np, Np] normalized adjacency

    def gconv(h_md, w, b):
        # X @ W first (narrow contraction), then A_hat @ (XW).  Preserve this
        # ordering: for conv2 it contracts down to dim_size columns before the
        # N x N multiply.  Accumulate in f32 on the MXU.
        xw = jnp.dot(h_md, w, preferred_element_type=jnp.float32)
        return jnp.dot(a, xw.astype(md), preferred_element_type=jnp.float32) + b

    # conv1 + tanh   (dropout p=0 is identity); x_ref is already matmul dtype.
    h = jnp.tanh(gconv(x_ref[...], w1_ref[...], b1_ref[...]))

    # GResBlocks: h = tanh(block.conv1(h) + h)   (block.conv2 unused in forward)
    for i in range(depth):                 # static unrolled loop (depth small)
        h = jnp.tanh(gconv(h.astype(md), wb_ref[i], bb_ref[i]) + h)

    # conv2, no activation
    c = gconv(h.astype(md), w2_ref[...], b2_ref[...])

    h_ref[...] = h.astype(h_ref.dtype)
    c_ref[...] = c.astype(c_ref.dtype)     # lane-dense padded store (Dp = 128)


# ----------------------------------------------------------------------------
# One-time preparation: pad/cast A_hat and weights (hoisted out of per-step path)
# ----------------------------------------------------------------------------
def prepare_gbottleneck(params, a_norm, *, matmul_dtype=jnp.bfloat16):
    """Pad + cast the static operands ONCE per (topology, weights).

    Returns (prepared_arrays_dict, static_config_dict)."""
    n = a_norm.shape[0]
    w1, b1 = params["conv1"]
    w2, b2 = params["conv2"]
    blocks = params["blocks"]
    depth = len(blocks)
    cin, f = w1.shape
    d = w2.shape[1]

    # Pad N and every channel dim to lane multiples (128) so the A_hat lane dim,
    # the Np contraction, and every store are un-masked / lane-dense.
    np_ = _round_up(n, 128)
    cin_p = _round_up(cin, 128)
    f_p = _round_up(f, 128)
    d_p = _round_up(d, 128)

    a_p = _pad2(a_norm, np_, np_, matmul_dtype)   # bf16 A_hat: half VMEM
    w1_p = _pad2(w1, cin_p, f_p, matmul_dtype)
    b1_p = _pad2(b1, 1, f_p, jnp.float32)
    w2_p = _pad2(w2, f_p, d_p, matmul_dtype)
    b2_p = _pad2(b2, 1, d_p, jnp.float32)
    if depth > 0:
        wb_p = jnp.stack([_pad2(w, f_p, f_p, matmul_dtype) for (w, _) in blocks])
        bb_p = jnp.stack([_pad2(b, 1, f_p, jnp.float32) for (_, b) in blocks])
    else:  # keep kernel signature stable; refs are simply unused
        wb_p = jnp.zeros((1, f_p, f_p), matmul_dtype)
        bb_p = jnp.zeros((1, 1, f_p), jnp.float32)

    prepared = dict(a=a_p, w1=w1_p, b1=b1_p, wb=wb_p, bb=bb_p, w2=w2_p, b2=b2_p)
    static = dict(depth=depth, feature_size=f, dim_size=d,
                  matmul_dtype=matmul_dtype)
    return prepared, static


# ----------------------------------------------------------------------------
# Per-step wrapper: pad x, launch the single fused pallas_call.
# ----------------------------------------------------------------------------
def gbottleneck_forward(prepared, x, *, depth, feature_size, dim_size,
                        matmul_dtype=jnp.bfloat16):
    """Fused GBottleNeck forward.  Returns (h [N, F], c [N, dim_size])."""
    n = x.shape[0]
    a_p = prepared["a"]
    np_ = a_p.shape[0]
    cin_p = prepared["w1"].shape[0]
    f_p = prepared["w1"].shape[1]
    d_p = prepared["w2"].shape[1]
    assert n <= np_ and x.shape[1] <= cin_p

    # x changes every step -> pad/cast inside the jitted path, directly to the
    # matmul dtype (x is only ever an MXU operand).
    x_p = _pad2(x, np_, cin_p, matmul_dtype)

    # VMEM budget: single grid point, whole-array residency.  ALWAYS pass an
    # explicit limit (v5e defaults to 16 MiB scoped, v6e/v7x to 32 MiB); cap at
    # ~75% of this chip's physical VMEM (~48 MiB v7x, ~96 MiB v5e/v6e) to leave
    # headroom for f32 intermediates, compiler scratch and IO staging.
    operands = (a_p, x_p, prepared["w1"], prepared["b1"], prepared["wb"],
                prepared["bb"], prepared["w2"], prepared["b2"])
    vmem_est = sum(int(o.size) * o.dtype.itemsize for o in operands)
    vmem_est += 4 * np_ * (f_p + d_p)                # f32 outputs h, c
    cap = int(0.75 * _vmem_capacity_bytes())
    limit = int(min(max(2 * vmem_est + (4 << 20), 16 << 20), cap))
    compiler_params = pltpu.CompilerParams(vmem_limit_bytes=limit)
    # TODO(synk): if vmem_est exceeds `cap`, switch to the A_hat row-block
    # streaming path (h + weights resident, A_hat via manual DMA) instead of
    # full residency.

    vmem_spec = pl.BlockSpec(memory_space=pltpu.MemorySpace.VMEM)
    h_pad, c_pad = pl.pallas_call(
        functools.partial(_gbottleneck_kernel, depth=depth),
        out_shape=(jax.ShapeDtypeStruct((np_, f_p), jnp.float32),
                   jax.ShapeDtypeStruct((np_, d_p), jnp.float32)),
        in_specs=[vmem_spec] * 8,
        out_specs=(vmem_spec, vmem_spec),
        compiler_params=compiler_params,
    )(a_p, x_p, prepared["w1"], prepared["b1"], prepared["wb"],
      prepared["bb"], prepared["w2"], prepared["b2"])

    return h_pad[:n, :feature_size], c_pad[:n, :dim_size]


# ----------------------------------------------------------------------------
# Plain-JAX glue: adjacency normalization, parameter init, reference forward.
# ----------------------------------------------------------------------------
def build_norm_adj(edge_index, n):
    """Dense GCN-normalized adjacency A_hat = D^-1/2 (A + I) D^-1/2.

    Static per mesh topology: build once and reuse (do NOT recompute per step).
    """
    src, dst = edge_index
    a = jnp.zeros((n, n), jnp.float32).at[src, dst].set(1.0)
    a = jnp.maximum(a, a.T)                     # symmetrize
    a = a + jnp.eye(n, dtype=jnp.float32)       # self loops
    d = a.sum(axis=-1)
    dinv = 1.0 / jnp.sqrt(d)
    return a * dinv[:, None] * dinv[None, :]


def init_params(key, feature_size, dim_size, depth):
    """Deterministic 'normal' weight init matching the module's layer shapes."""
    def _layer(k, cin, cout):
        kw, kb = jax.random.split(k)
        w = 0.1 * jax.random.normal(kw, (cin, cout), jnp.float32)
        b = 0.01 * jax.random.normal(kb, (1, cout), jnp.float32)
        return w, b

    keys = jax.random.split(key, depth + 2)
    params = {
        "conv1": _layer(keys[0], 2 * feature_size, feature_size),
        "conv2": _layer(keys[1], feature_size, dim_size),
        "blocks": [
            _layer(keys[2 + i], feature_size, feature_size) for i in range(depth)
        ],
    }
    # TODO(synk): GBottleNeck.conv3 (nn.Linear) and GResBlock.conv2 are defined
    # in __init__ but never used in forward; they are intentionally omitted.
    return params


def reference_forward(params, x, a_norm):
    """Pure-JAX f32 reference of the PyTorch forward (for parity checks)."""
    def gconv(h, w, b):
        return a_norm @ (h @ w) + b
    w1, b1 = params["conv1"]
    h = jnp.tanh(gconv(x, w1, b1))
    for (w, b) in params["blocks"]:
        h = jnp.tanh(gconv(h, w, b) + h)
    w2, b2 = params["conv2"]
    return h, gconv(h, w2, b2)


# ----------------------------------------------------------------------------
if __name__ == "__main__":
    key = jax.random.PRNGKey(0)
    k_x, k_p = jax.random.split(key)

    N = 16            # number of graph nodes
    FEATURE_SIZE = 32
    DIM_SIZE = 3
    DEPTH = 2

    # node features: [N, 2*feature_size]  (conv1 expects 2F input channels)
    x = jax.random.normal(k_x, (N, 2 * FEATURE_SIZE), jnp.float32)

    # ring graph edge_index (both directions), shape [2, 2N]
    idx = jnp.arange(N)
    src = jnp.concatenate([idx, (idx + 1) % N])
    dst = jnp.concatenate([(idx + 1) % N, idx])
    edge_index = jnp.stack([src, dst], axis=0)

    # Static per (topology, weights): build + pad/cast ONCE, reuse every step.
    a_norm = build_norm_adj(edge_index, N)
    params = init_params(k_p, FEATURE_SIZE, DIM_SIZE, DEPTH)
    prepared, static = prepare_gbottleneck(params, a_norm)

    fwd = jax.jit(functools.partial(gbottleneck_forward, **static))
    h, c = fwd(prepared, x)
    jax.block_until_ready((h, c))

    assert h.shape == (N, FEATURE_SIZE), h.shape
    assert c.shape == (N, DIM_SIZE), c.shape
    assert bool(jnp.all(jnp.isfinite(h))) and bool(jnp.all(jnp.isfinite(c)))

    # Loose parity vs f32 reference (operands are bf16 on the MXU).
    h_ref, c_ref = reference_forward(params, x, a_norm)
    assert float(jnp.max(jnp.abs(h - h_ref))) < 0.1
    assert float(jnp.max(jnp.abs(c - c_ref))) < 0.1

    print("KERNEL_OK")
</pallas_src>

<mosaic_0001>
module attributes {stable_mosaic.version = 11 : i64} {
  func.func @_gbottleneck_kernel(%arg0: memref<128x128xbf16, #tpu.memory_space<vmem>>, %arg1: memref<128x128xbf16, #tpu.memory_space<vmem>>, %arg2: memref<128x128xbf16, #tpu.memory_space<vmem>>, %arg3: memref<1x128xf32, #tpu.memory_space<vmem>>, %arg4: memref<2x128x128xbf16, #tpu.memory_space<vmem>>, %arg5: memref<2x1x128xf32, #tpu.memory_space<vmem>>, %arg6: memref<128x128xbf16, #tpu.memory_space<vmem>>, %arg7: memref<1x128xf32, #tpu.memory_space<vmem>>, %arg8: memref<128x128xf32, #tpu.memory_space<vmem>>, %arg9: memref<128x128xf32, #tpu.memory_space<vmem>>) attributes {dimension_semantics = [], scalar_prefetch = 0 : i64, scratch_operands = 0 : i64, tpu.core_type = #tpu.core_type<tc>} {
    %c0 = arith.constant 0 : index
    %c0_0 = arith.constant 0 : index
    %0 = vector.load %arg0[%c0, %c0_0] : memref<128x128xbf16, #tpu.memory_space<vmem>>, vector<128x128xbf16>
    %c0_1 = arith.constant 0 : index
    %c0_2 = arith.constant 0 : index
    %1 = vector.load %arg1[%c0_1, %c0_2] : memref<128x128xbf16, #tpu.memory_space<vmem>>, vector<128x128xbf16>
    %c0_3 = arith.constant 0 : index
    %c0_4 = arith.constant 0 : index
    %2 = vector.load %arg2[%c0_3, %c0_4] : memref<128x128xbf16, #tpu.memory_space<vmem>>, vector<128x128xbf16>
    %c0_5 = arith.constant 0 : index
    %c0_6 = arith.constant 0 : index
    %3 = vector.load %arg3[%c0_5, %c0_6] : memref<1x128xf32, #tpu.memory_space<vmem>>, vector<1x128xf32>
    %cst = arith.constant dense<0.000000e+00> : vector<128x128xf32>
    %4 = tpu.matmul %1, %2, %cst {dimension_numbers = #tpu.dot_dimension_numbers<[1], [0], [0], [1], [0, 0, 1, 1], [], []>} : vector<128x128xbf16>, vector<128x128xbf16>, vector<128x128xf32> -> vector<128x128xf32>
    %5 = arith.truncf %4 : vector<128x128xf32> to vector<128x128xbf16>
    %cst_7 = arith.constant dense<0.000000e+00> : vector<128x128xf32>
    %6 = tpu.matmul %0, %5, %cst_7 {dimension_numbers = #tpu.dot_dimension_numbers<[1], [0], [0], [1], [0, 0, 1, 1], [], []>} : vector<128x128xbf16>, vector<128x128xbf16>, vector<128x128xf32> -> vector<128x128xf32>
    %7 = vector.broadcast %3 : vector<1x128xf32> to vector<128x128xf32>
    %8 = arith.addf %6, %7 : vector<128x128xf32>
    %9 = math.tanh %8 : vector<128x128xf32>
    %10 = arith.truncf %9 : vector<128x128xf32> to vector<128x128xbf16>
    %c0_8 = arith.constant 0 : index
    %c0_9 = arith.constant 0 : index
    %c0_10 = arith.constant 0 : index
    %11 = vector.load %arg4[%c0_8, %c0_9, %c0_10] : memref<2x128x128xbf16, #tpu.memory_space<vmem>>, vector<1x128x128xbf16>
    %12 = vector.shape_cast %11 : vector<1x128x128xbf16> to vector<128x128xbf16>
    %c0_11 = arith.constant 0 : index
    %c0_12 = arith.constant 0 : index
    %c0_13 = arith.constant 0 : index
    %13 = vector.load %arg5[%c0_11, %c0_12, %c0_13] : memref<2x1x128xf32, #tpu.memory_space<vmem>>, vector<1x1x128xf32>
    %14 = vector.shape_cast %13 : vector<1x1x128xf32> to vector<1x128xf32>
    %cst_14 = arith.constant dense<0.000000e+00> : vector<128x128xf32>
    %15 = tpu.matmul %10, %12, %cst_14 {dimension_numbers = #tpu.dot_dimension_numbers<[1], [0], [0], [1], [0, 0, 1, 1], [], []>} : vector<128x128xbf16>, vector<128x128xbf16>, vector<128x128xf32> -> vector<128x128xf32>
    %16 = arith.truncf %15 : vector<128x128xf32> to vector<128x128xbf16>
    %cst_15 = arith.constant dense<0.000000e+00> : vector<128x128xf32>
    %17 = tpu.matmul %0, %16, %cst_15 {dimension_numbers = #tpu.dot_dimension_numbers<[1], [0], [0], [1], [0, 0, 1, 1], [], []>} : vector<128x128xbf16>, vector<128x128xbf16>, vector<128x128xf32> -> vector<128x128xf32>
    %18 = vector.broadcast %14 : vector<1x128xf32> to vector<128x128xf32>
    %19 = arith.addf %17, %18 : vector<128x128xf32>
    %20 = arith.addf %19, %9 : vector<128x128xf32>
    %21 = math.tanh %20 : vector<128x128xf32>
    %22 = arith.truncf %21 : vector<128x128xf32> to vector<128x128xbf16>
    %c1 = arith.constant 1 : index
    %c0_16 = arith.constant 0 : index
    %c0_17 = arith.constant 0 : index
    %23 = vector.load %arg4[%c1, %c0_16, %c0_17] : memref<2x128x128xbf16, #tpu.memory_space<vmem>>, vector<1x128x128xbf16>
    %24 = vector.shape_cast %23 : vector<1x128x128xbf16> to vector<128x128xbf16>
    %c1_18 = arith.constant 1 : index
    %c0_19 = arith.constant 0 : index
    %c0_20 = arith.constant 0 : index
    %25 = vector.load %arg5[%c1_18, %c0_19, %c0_20] : memref<2x1x128xf32, #tpu.memory_space<vmem>>, vector<1x1x128xf32>
    %26 = vector.shape_cast %25 : vector<1x1x128xf32> to vector<1x128xf32>
    %cst_21 = arith.constant dense<0.000000e+00> : vector<128x128xf32>
    %27 = tpu.matmul %22, %24, %cst_21 {dimension_numbers = #tpu.dot_dimension_numbers<[1], [0], [0], [1], [0, 0, 1, 1], [], []>} : vector<128x128xbf16>, vector<128x128xbf16>, vector<128x128xf32> -> vector<128x128xf32>
    %28 = arith.truncf %27 : vector<128x128xf32> to vector<128x128xbf16>
    %cst_22 = arith.constant dense<0.000000e+00> : vector<128x128xf32>
    %29 = tpu.matmul %0, %28, %cst_22 {dimension_numbers = #tpu.dot_dimension_numbers<[1], [0], [0], [1], [0, 0, 1, 1], [], []>} : vector<128x128xbf16>, vector<128x128xbf16>, vector<128x128xf32> -> vector<128x128xf32>
    %30 = vector.broadcast %26 : vector<1x128xf32> to vector<128x128xf32>
    %31 = arith.addf %29, %30 : vector<128x128xf32>
    %32 = arith.addf %31, %21 : vector<128x128xf32>
    %33 = math.tanh %32 : vector<128x128xf32>
    %34 = arith.truncf %33 : vector<128x128xf32> to vector<128x128xbf16>
    %c0_23 = arith.constant 0 : index
    %c0_24 = arith.constant 0 : index
    %35 = vector.load %arg6[%c0_23, %c0_24] : memref<128x128xbf16, #tpu.memory_space<vmem>>, vector<128x128xbf16>
    %c0_25 = arith.constant 0 : index
    %c0_26 = arith.constant 0 : index
    %36 = vector.load %arg7[%c0_25, %c0_26] : memref<1x128xf32, #tpu.memory_space<vmem>>, vector<1x128xf32>
    %cst_27 = arith.constant dense<0.000000e+00> : vector<128x128xf32>
    %37 = tpu.matmul %34, %35, %cst_27 {dimension_numbers = #tpu.dot_dimension_numbers<[1], [0], [0], [1], [0, 0, 1, 1], [], []>} : vector<128x128xbf16>, vector<128x128xbf16>, vector<128x128xf32> -> vector<128x128xf32>
    %38 = arith.truncf %37 : vector<128x128xf32> to vector<128x128xbf16>
    %cst_28 = arith.constant dense<0.000000e+00> : vector<128x128xf32>
    %39 = tpu.matmul %0, %38, %cst_28 {dimension_numbers = #tpu.dot_dimension_numbers<[1], [0], [0], [1], [0, 0, 1, 1], [], []>} : vector<128x128xbf16>, vector<128x128xbf16>, vector<128x128xf32> -> vector<128x128xf32>
    %40 = vector.broadcast %36 : vector<1x128xf32> to vector<128x128xf32>
    %41 = arith.addf %39, %40 : vector<128x128xf32>
    %c0_29 = arith.constant 0 : index
    %c0_30 = arith.constant 0 : index
    %42 = vector.load %arg8[%c0_29, %c0_30] : memref<128x128xf32, #tpu.memory_space<vmem>>, vector<128x128xf32>
    tpu.vector_store %arg8[%c0_29, %c0_30], %33 {strides = array<i32>} : memref<128x128xf32, #tpu.memory_space<vmem>>, vector<128x128xf32>,
    %c0_31 = arith.constant 0 : index
    %c0_32 = arith.constant 0 : index
    %43 = vector.load %arg9[%c0_31, %c0_32] : memref<128x128xf32, #tpu.memory_space<vmem>>, vector<128x128xf32>
    tpu.vector_store %arg9[%c0_31, %c0_32], %41 {strides = array<i32>} : memref<128x128xf32, #tpu.memory_space<vmem>>, vector<128x128xf32>,
    return
  }
}

</mosaic_0001>

<llo_original>
// kernel: gbottleneck_forward.1
$region0: #{gbottleneck_forward.1}
  #allocation0 [shape = 'u32[]', space=smem, size = 0x4, offset = 0x4, fixed_abs, tag = 'smem constant byte address 0x4 - core index']
  #allocation1 [shape = 'u32[72,128]{1,0:T(1,128)}', space=vmem, size = 0x9000, scoped, tag = 'internal scratch']
  %s0 = inlined_call_operand.vmem [shape: bf16[128,128], index: 0, kind: input, shape index: {}]
  %s1 = inlined_call_operand.vmem [shape: bf16[128,128], index: 1, kind: input, shape index: {}]
  %s2 = inlined_call_operand.hbm [shape: bf16[128,128], index: 2, kind: input, shape index: {}]
  %s3 = inlined_call_operand.vmem [shape: f32[1,128], index: 3, kind: input, shape index: {}]
  %s4 = inlined_call_operand.hbm [shape: bf16[2,128,128], index: 4, kind: input, shape index: {}]
  %s5 = inlined_call_operand.vmem [shape: f32[2,1,128], index: 5, kind: input, shape index: {}]
  %s6 = inlined_call_operand.hbm [shape: bf16[128,128], index: 6, kind: input, shape index: {}]
  %s7 = inlined_call_operand.vmem [shape: f32[1,128], index: 7, kind: input, shape index: {}]
  %s8 = inlined_call_operand.vmem [shape: f32[128,128], index: 8, kind: output, shape index: {0}]
  %s9 = inlined_call_operand.vmem [shape: f32[128,128], index: 9, kind: output, shape index: {1}]
  %10 = xla_tuple %s8, %s9
  %s11 = sld [smem:[#allocation0]]
  $region62: #{gbottleneck_forward.1} parent=0
    _
  %s13 = ssub.s32 1, %s11
  %s14 = scalar_select 0, %s13, %s11
  $region1: #{gbottleneck_forward.1} parent=0
    #allocation2 [shape = 'u8[32768]{0}', space=vmem, size = 0x8000, scoped, tag = 'input window, operand 2, single buffered']
    #allocation3 [shape = 's32[1]{0}', space=sflag, size = 0x4, scoped, tag = 'scoped memory for gbottleneck_forward.1']
    #allocation4 [shape = 'u8[65536]{0}', space=vmem, size = 0x10000, scoped, tag = 'input window, operand 4, single buffered']
    #allocation5 [shape = 's32[1]{0}', space=sflag, size = 0x4, scoped, tag = 'scoped memory for gbottleneck_forward.1']
    #allocation6 [shape = 'u8[32768]{0}', space=vmem, size = 0x8000, scoped, tag = 'input window, operand 6, single buffered']
    %15 = vsyncpa [#allocation3], 0
    %16 = vsyncpa [#allocation5], 0
    // Predicated region
    $region2: #{gbottleneck_forward.1} parent=1 // pred_check
      _
    $region3: #{gbottleneck_forward.1} parent=1 // pred_check_branch
      %18 = sbr.rel (0) target = $region5
    $region4: #{gbottleneck_forward.1} parent=1 // pred_region
      _
    $region5: #{gbottleneck_forward.1} parent=1 // pred_fallthru
      _
    // Predicated region
    $region6: #{gbottleneck_forward.1} parent=1 // pred_check
      _
    $region7: #{gbottleneck_forward.1} parent=1 // pred_check_branch
      %20 = sbr.rel (0) target = $region9
    $region8: #{gbottleneck_forward.1} parent=1 // pred_region
      _
    $region9: #{gbottleneck_forward.1} parent=1 // pred_fallthru
      _
    // Predicated region
    $region10: #{gbottleneck_forward.1} parent=1 // pred_check
      _
    $region11: #{gbottleneck_forward.1} parent=1 // pred_check_branch
      %22 = sbr.rel (0) target = $region13
    $region12: #{gbottleneck_forward.1} parent=1 // pred_region
      %24 = vsyncadd [#allocation3], 0
      %s25 = sshll.u32 %s2, 4
      %s26 = int_to_ptr.hbm [resolvable:$true] %s25
      %s27 = sshll.u32 [#allocation2], 4
      %s28 = int_to_ptr.vmem [resolvable:$true] %s27
      %33 = dma.hbm_to_vmem [thread:$0]  %s26, 1024, %s28, [#allocation3], 64, 64, 4
    $region13: #{gbottleneck_forward.1} parent=1 // pred_fallthru
      _
    // Predicated region
    $region14: #{gbottleneck_forward.1} parent=1 // pred_check
      _
    $region15: #{gbottleneck_forward.1} parent=1 // pred_check_branch
      %35 = sbr.rel (0) target = $region17
    $region16: #{gbottleneck_forward.1} parent=1 // pred_region
      _
    $region17: #{gbottleneck_forward.1} parent=1 // pred_fallthru
      _
    // Predicated region
    $region18: #{gbottleneck_forward.1} parent=1 // pred_check
      _
    $region19: #{gbottleneck_forward.1} parent=1 // pred_check_branch
      %37 = sbr.rel (0) target = $region21
    $region20: #{gbottleneck_forward.1} parent=1 // pred_region
      %39 = vsyncadd [#allocation5], 0
      %s40 = sshll.u32 %s4, 4
      %s41 = int_to_ptr.hbm [resolvable:$true] %s40
      %s42 = sshll.u32 [#allocation4], 4
      %s43 = int_to_ptr.vmem [resolvable:$true] %s42
      %48 = dma.hbm_to_vmem [thread:$0]  %s41, 2048, %s43, [#allocation5], 64, 64, 4
    $region21: #{gbottleneck_forward.1} parent=1 // pred_fallthru
      _
    // Predicated region
    $region22: #{gbottleneck_forward.1} parent=1 // pred_check
      _
    $region23: #{gbottleneck_forward.1} parent=1 // pred_check_branch
      %50 = sbr.rel (0) target = $region25
    $region24: #{gbottleneck_forward.1} parent=1 // pred_region
      _
    $region25: #{gbottleneck_forward.1} parent=1 // pred_fallthru
      _
    // Predicated region
    $region26: #{gbottleneck_forward.1} parent=1 // pred_check
      _
    $region27: #{gbottleneck_forward.1} parent=1 // pred_check_branch
      %52 = sbr.rel (0) target = $region29
    $region28: #{gbottleneck_forward.1} parent=1 // pred_region
      %54 = vsyncadd [#allocation5], 0
      %s55 = sshll.u32 %s6, 4
      %s56 = int_to_ptr.hbm [resolvable:$true] %s55
      %s57 = sshll.u32 [#allocation6], 4
      %s58 = int_to_ptr.vmem [resolvable:$true] %s57
      %63 = dma.hbm_to_vmem [thread:$0]  %s56, 1024, %s58, [#allocation5], 64, 64, 4
    $region29: #{gbottleneck_forward.1} parent=1 // pred_fallthru
      _
    // Predicated region
    $region30: #{gbottleneck_forward.1} parent=1 // pred_check
      _
    $region31: #{gbottleneck_forward.1} parent=1 // pred_check_branch
      %65 = sbr.rel (0) target = $region33
    $region32: #{gbottleneck_forward.1} parent=1 // pred_region
      _
    $region33: #{gbottleneck_forward.1} parent=1 // pred_fallthru
      _
    // Predicated region
    $region34: #{gbottleneck_forward.1} parent=1 // pred_check
      _
    $region35: #{gbottleneck_forward.1} parent=1 // pred_check_branch
      %67 = sbr.rel (0) target = $region37
    $region36: #{gbottleneck_forward.1} parent=1 // pred_region
      %69 = dma.done [#allocation3], 1024
    $region37: #{gbottleneck_forward.1} parent=1 // pred_fallthru
      _
    // Predicated region
    $region38: #{gbottleneck_forward.1} parent=1 // pred_check
      _
    $region39: #{gbottleneck_forward.1} parent=1 // pred_check_branch
      %71 = sbr.rel (0) target = $region41
    $region40: #{gbottleneck_forward.1} parent=1 // pred_region
      %73 = dma.done [#allocation5], 2048
    $region41: #{gbottleneck_forward.1} parent=1 // pred_fallthru
      _
    // Predicated region
    $region42: #{gbottleneck_forward.1} parent=1 // pred_check
      _
    $region43: #{gbottleneck_forward.1} parent=1 // pred_check_branch
      %75 = sbr.rel (0) target = $region45
    $region44: #{gbottleneck_forward.1} parent=1 // pred_region
      %77 = dma.done [#allocation5], 1024
    $region45: #{gbottleneck_forward.1} parent=1 // pred_fallthru
      _
    %v78 = vld [vmem:[%s0] sm:$0xf]
    %v79 = vld [vmem:[%s0 + $0x4] sm:$0xf]
    %v80 = vld [vmem:[%s0 + $0x8] sm:$0xf]
    %v81 = vld [vmem:[%s0 + $0xc] sm:$0xf]
    %v82 = vld [vmem:[%s0 + $0x10] sm:$0xf]
    %v83 = vld [vmem:[%s0 + $0x14] sm:$0xf]
    %v84 = vld [vmem:[%s0 + $0x18] sm:$0xf]
    %v85 = vld [vmem:[%s0 + $0x1c] sm:$0xf]
    %v86 = vld [vmem:[%s0 + $0x20] sm:$0xf]
    %v87 = vld [vmem:[%s0 + $0x24] sm:$0xf]
    %v88 = vld [vmem:[%s0 + $0x28] sm:$0xf]
    %v89 = vld [vmem:[%s0 + $0x2c] sm:$0xf]
    %v90 = vld [vmem:[%s0 + $0x30] sm:$0xf]
    %v91 = vld [vmem:[%s0 + $0x34] sm:$0xf]
    %v92 = vld [vmem:[%s0 + $0x38] sm:$0xf]
    %v93 = vld [vmem:[%s0 + $0x3c] sm:$0xf]
    %v94 = vld [vmem:[%s1] sm:$0xf]
    %v95 = vld [vmem:[%s1 + $0x4] sm:$0xf]
    %v96 = vld [vmem:[%s1 + $0x8] sm:$0xf]
    %v97 = vld [vmem:[%s1 + $0xc] sm:$0xf]
    %v98 = vld [vmem:[%s1 + $0x10] sm:$0xf]
    %v99 = vld [vmem:[%s1 + $0x14] sm:$0xf]
    %v100 = vld [vmem:[%s1 + $0x18] sm:$0xf]
    %v101 = vld [vmem:[%s1 + $0x1c] sm:$0xf]
    %v102 = vld [vmem:[%s1 + $0x20] sm:$0xf]
    %v103 = vld [vmem:[%s1 + $0x24] sm:$0xf]
    %v104 = vld [vmem:[%s1 + $0x28] sm:$0xf]
    %v105 = vld [vmem:[%s1 + $0x2c] sm:$0xf]
    %v106 = vld [vmem:[%s1 + $0x30] sm:$0xf]
    %v107 = vld [vmem:[%s1 + $0x34] sm:$0xf]
    %v108 = vld [vmem:[%s1 + $0x38] sm:$0xf]
    %v109 = vld [vmem:[%s1 + $0x3c] sm:$0xf]
    %v110 = vld [vmem:[#allocation2] sm:$0xf]
    %v111 = vld [vmem:[#allocation2 + $0x4] sm:$0xf]
    %v112 = vld [vmem:[#allocation2 + $0x8] sm:$0xf]
    %v113 = vld [vmem:[#allocation2 + $0xc] sm:$0xf]
    %v114 = vld [vmem:[#allocation2 + $0x10] sm:$0xf]
    %v115 = vld [vmem:[#allocation2 + $0x14] sm:$0xf]
    %v116 = vld [vmem:[#allocation2 + $0x18] sm:$0xf]
    %v117 = vld [vmem:[#allocation2 + $0x1c] sm:$0xf]
    %v118 = vld [vmem:[#allocation2 + $0x20] sm:$0xf]
    %v119 = vld [vmem:[#allocation2 + $0x24] sm:$0xf]
    %v120 = vld [vmem:[#allocation2 + $0x28] sm:$0xf]
    %v121 = vld [vmem:[#allocation2 + $0x2c] sm:$0xf]
    %v122 = vld [vmem:[#allocation2 + $0x30] sm:$0xf]
    %v123 = vld [vmem:[#allocation2 + $0x34] sm:$0xf]
    %v124 = vld [vmem:[#allocation2 + $0x38] sm:$0xf]
    %v125 = vld [vmem:[#allocation2 + $0x3c] sm:$0xf]
    %v126 = vld [vmem:[%s3] sm:$0x1]
    %v143 = vunpack.c.l.b16 %v94
    %v144 = vunpack.c.l.b16 %v95
    %v145 = vunpack.c.l.b16 %v96
    %v146 = vunpack.c.l.b16 %v97
    %v147 = vunpack.c.l.b16 %v98
    %v148 = vunpack.c.l.b16 %v99
    %v149 = vunpack.c.l.b16 %v100
    %v150 = vunpack.c.l.b16 %v101
    %v151 = vunpack.c.l.b16 %v102
    %v152 = vunpack.c.l.b16 %v103
    %v153 = vunpack.c.l.b16 %v104
    %v154 = vunpack.c.l.b16 %v105
    %v155 = vunpack.c.l.b16 %v106
    %v156 = vunpack.c.l.b16 %v107
    %v157 = vunpack.c.l.b16 %v108
    %v158 = vunpack.c.l.b16 %v109
    %v159 = vpack.c.b16 %v144, %v143
    %v160 = vpack.c.b16 %v146, %v145
    %v161 = vpack.c.b16 %v148, %v147
    %v162 = vpack.c.b16 %v150, %v149
    %v163 = vpack.c.b16 %v152, %v151
    %v164 = vpack.c.b16 %v154, %v153
    %v165 = vpack.c.b16 %v156, %v155
    %v166 = vpack.c.b16 %v158, %v157
    %v191 = vunpack.c.l.b16 %v110
    %v192 = vunpack.c.l.b16 %v111
    %v193 = vunpack.c.l.b16 %v112
    %v194 = vunpack.c.l.b16 %v113
    %v195 = vunpack.c.l.b16 %v114
    %v196 = vunpack.c.l.b16 %v115
    %v197 = vunpack.c.l.b16 %v116
    %v198 = vunpack.c.l.b16 %v117
    %v199 = vunpack.c.l.b16 %v118
    %v200 = vunpack.c.l.b16 %v119
    %v201 = vunpack.c.l.b16 %v120
    %v202 = vunpack.c.l.b16 %v121
    %v203 = vunpack.c.l.b16 %v122
    %v204 = vunpack.c.l.b16 %v123
    %v205 = vunpack.c.l.b16 %v124
    %v206 = vunpack.c.l.b16 %v125
    %v207 = vpack.c.b16 %v192, %v191
    %v208 = vpack.c.b16 %v194, %v193
    %v209 = vpack.c.b16 %v196, %v195
    %v210 = vpack.c.b16 %v198, %v197
    %v211 = vpack.c.b16 %v200, %v199
    %v212 = vpack.c.b16 %v202, %v201
    %v213 = vpack.c.b16 %v204, %v203
    %v214 = vpack.c.b16 %v206, %v205
    %223 = vmatpush.bf16.msra.mxu0 %v214
    %224 = vmatpush.bf16.msra.mxu0 %v213
    %225 = vmatpush.bf16.msra.mxu0 %v212
    %226 = vmatpush.bf16.msra.mxu0 %v211
    %227 = vmatpush.bf16.msra.mxu0 %v210
    %228 = vmatpush.bf16.msra.mxu0 %v209
    %229 = vmatpush.bf16.msra.mxu0 %v208
    %230 = vmatpush.bf16.msra.mxu0 %v207
    %231 = vmatmul.bf16.gmra.mxu0 %v159
    %v232 = vpop.f32.mrf.mxu0
    %v233 = vadd.f32 0.0, %v232
    %v234 = vpop.f32.mrf.mxu0
    %v235 = vadd.f32 0.0, %v234
    %236 = vmatmul.bf16.gmra.mxu0 %v160
    %v237 = vpop.f32.mrf.mxu0
    %v238 = vadd.f32 0.0, %v237
    %v239 = vpop.f32.mrf.mxu0
    %v240 = vadd.f32 0.0, %v239
    %241 = vmatmul.bf16.gmra.mxu0 %v161
    %v242 = vpop.f32.mrf.mxu0
    %v243 = vadd.f32 0.0, %v242
    %v244 = vpop.f32.mrf.mxu0
    %v245 = vadd.f32 0.0, %v244
    %246 = vmatmul.bf16.gmra.mxu0 %v162
    %v247 = vpop.f32.mrf.mxu0
    %v248 = vadd.f32 0.0, %v247
    %v249 = vpop.f32.mrf.mxu0
    %v250 = vadd.f32 0.0, %v249
    %251 = vmatmul.bf16.gmra.mxu0 %v163
    %v252 = vpop.f32.mrf.mxu0
    %v253 = vadd.f32 0.0, %v252
    %v254 = vpop.f32.mrf.mxu0
    %v255 = vadd.f32 0.0, %v254
    %256 = vmatmul.bf16.gmra.mxu0 %v164
    %v257 = vpop.f32.mrf.mxu0
    %v258 = vadd.f32 0.0, %v257
    %v259 = vpop.f32.mrf.mxu0
    %v260 = vadd.f32 0.0, %v259
    %261 = vmatmul.bf16.gmra.mxu0 %v165
    %v262 = vpop.f32.mrf.mxu0
    %v263 = vadd.f32 0.0, %v262
    %v264 = vpop.f32.mrf.mxu0
    %v265 = vadd.f32 0.0, %v264
    %266 = vmatmul.bf16.gmra.mxu0 %v166
    %v267 = vpop.f32.mrf.mxu0
    %v268 = vadd.f32 0.0, %v267
    %v269 = vpop.f32.mrf.mxu0
    %v270 = vadd.f32 0.0, %v269
    %271 = vdwg.mxu0
    %v272 = vpack.c.bf16 %v235, %v233
    %v273 = vpack.c.bf16 %v240, %v238
    %v274 = vpack.c.bf16 %v245, %v243
    %v275 = vpack.c.bf16 %v250, %v248
    %v276 = vpack.c.bf16 %v255, %v253
    %v277 = vpack.c.bf16 %v260, %v258
    %v278 = vpack.c.bf16 %v265, %v263
    %v279 = vpack.c.bf16 %v270, %v268
    %v281 = vperm.slane %v126, 0
    %v299 = vunpack.c.l.b16 %v78
    %v300 = vunpack.c.l.b16 %v79
    %v301 = vunpack.c.l.b16 %v80
    %v302 = vunpack.c.l.b16 %v81
    %v303 = vunpack.c.l.b16 %v82
    %v304 = vunpack.c.l.b16 %v83
    %v305 = vunpack.c.l.b16 %v84
    %v306 = vunpack.c.l.b16 %v85
    %v307 = vunpack.c.l.b16 %v86
    %v308 = vunpack.c.l.b16 %v87
    %v309 = vunpack.c.l.b16 %v88
    %v310 = vunpack.c.l.b16 %v89
    %v311 = vunpack.c.l.b16 %v90
    %v312 = vunpack.c.l.b16 %v91
    %v313 = vunpack.c.l.b16 %v92
    %v314 = vunpack.c.l.b16 %v93
    %v315 = vpack.c.b16 %v300, %v299
    %v316 = vpack.c.b16 %v302, %v301
    %v317 = vpack.c.b16 %v304, %v303
    %v318 = vpack.c.b16 %v306, %v305
    %v319 = vpack.c.b16 %v308, %v307
    %v320 = vpack.c.b16 %v310, %v309
    %v321 = vpack.c.b16 %v312, %v311
    %v322 = vpack.c.b16 %v314, %v313
    %331 = vmatpush.bf16.msra.mxu0 %v279
    %332 = vmatpush.bf16.msra.mxu0 %v278
    %333 = vmatpush.bf16.msra.mxu0 %v277
    %334 = vmatpush.bf16.msra.mxu0 %v276
    %335 = vmatpush.bf16.msra.mxu0 %v275
    %336 = vmatpush.bf16.msra.mxu0 %v274
    %337 = vmatpush.bf16.msra.mxu0 %v273
    %338 = vmatpush.bf16.msra.mxu0 %v272
    %339 = vmatmul.bf16.gmra.mxu0 %v315
    %v340 = vpop.f32.mrf.mxu0
    %v341 = vadd.f32 %v281, %v340
    %v342 = vpop.f32.mrf.mxu0
    %v343 = vadd.f32 %v281, %v342
    %344 = vmatmul.bf16.gmra.mxu0 %v316
    %v345 = vpop.f32.mrf.mxu0
    %v346 = vadd.f32 %v281, %v345
    %v347 = vpop.f32.mrf.mxu0
    %v348 = vadd.f32 %v281, %v347
    %349 = vmatmul.bf16.gmra.mxu0 %v317
    %v350 = vpop.f32.mrf.mxu0
    %v351 = vadd.f32 %v281, %v350
    %v352 = vpop.f32.mrf.mxu0
    %v353 = vadd.f32 %v281, %v352
    %354 = vmatmul.bf16.gmra.mxu0 %v318
    %v355 = vpop.f32.mrf.mxu0
    %v356 = vadd.f32 %v281, %v355
    %v357 = vpop.f32.mrf.mxu0
    %v358 = vadd.f32 %v281, %v357
    %359 = vmatmul.bf16.gmra.mxu0 %v319
    %v360 = vpop.f32.mrf.mxu0
    %v361 = vadd.f32 %v281, %v360
    %v362 = vpop.f32.mrf.mxu0
    %v363 = vadd.f32 %v281, %v362
    %364 = vmatmul.bf16.gmra.mxu0 %v320
    %v365 = vpop.f32.mrf.mxu0
    %v366 = vadd.f32 %v281, %v365
    %v367 = vpop.f32.mrf.mxu0
    %v368 = vadd.f32 %v281, %v367
    %369 = vmatmul.bf16.gmra.mxu0 %v321
    %v370 = vpop.f32.mrf.mxu0
    %v371 = vadd.f32 %v281, %v370
    %v372 = vpop.f32.mrf.mxu0
    %v373 = vadd.f32 %v281, %v372
    %374 = vmatmul.bf16.gmra.mxu0 %v322
    %v375 = vpop.f32.mrf.mxu0
    %v376 = vadd.f32 %v281, %v375
    %v377 = vpop.f32.mrf.mxu0
    %v378 = vadd.f32 %v281, %v377
    %379 = vdwg.mxu0
    %v380 = vtanh.pop %v341
    %v381 = vtanh.pop %v343
    %v382 = vtanh.pop %v346
    %v383 = vtanh.pop %v348
    %v384 = vtanh.pop %v351
    %v385 = vtanh.pop %v353
    %v386 = vtanh.pop %v356
    %v387 = vtanh.pop %v358
    %v388 = vtanh.pop %v361
    %v389 = vtanh.pop %v363
    %v390 = vtanh.pop %v366
    %v391 = vtanh.pop %v368
    %v392 = vtanh.pop %v371
    %v393 = vtanh.pop %v373
    %v394 = vtanh.pop %v376
    %v395 = vtanh.pop %v378
    %v396 = vpack.c.bf16 %v381, %v380
    %v397 = vpack.c.bf16 %v383, %v382
    %v398 = vpack.c.bf16 %v385, %v384
    %v399 = vpack.c.bf16 %v387, %v386
    %v400 = vpack.c.bf16 %v389, %v388
    %v401 = vpack.c.bf16 %v391, %v390
    %v402 = vpack.c.bf16 %v393, %v392
    %v403 = vpack.c.bf16 %v395, %v394
    %v404 = vld [vmem:[#allocation4] sm:$0xf]
    %v405 = vld [vmem:[#allocation4 + $0x4] sm:$0xf]
    %v406 = vld [vmem:[#allocation4 + $0x8] sm:$0xf]
    %v407 = vld [vmem:[#allocation4 + $0xc] sm:$0xf]
    %v408 = vld [vmem:[#allocation4 + $0x10] sm:$0xf]
    %v409 = vld [vmem:[#allocation4 + $0x14] sm:$0xf]
    %v410 = vld [vmem:[#allocation4 + $0x18] sm:$0xf]
    %v411 = vld [vmem:[#allocation4 + $0x1c] sm:$0xf]
    %v412 = vld [vmem:[#allocation4 + $0x20] sm:$0xf]
    %v413 = vld [vmem:[#allocation4 + $0x24] sm:$0xf]
    %v414 = vld [vmem:[#allocation4 + $0x28] sm:$0xf]
    %v415 = vld [vmem:[#allocation4 + $0x2c] sm:$0xf]
    %v416 = vld [vmem:[#allocation4 + $0x30] sm:$0xf]
    %v417 = vld [vmem:[#allocation4 + $0x34] sm:$0xf]
    %v418 = vld [vmem:[#allocation4 + $0x38] sm:$0xf]
    %v419 = vld [vmem:[#allocation4 + $0x3c] sm:$0xf]
    %v420 = vld [vmem:[%s5] sm:$0x1]
    %v437 = vunpack.c.l.b16 %v404
    %v438 = vunpack.c.l.b16 %v405
    %v439 = vunpack.c.l.b16 %v406
    %v440 = vunpack.c.l.b16 %v407
    %v441 = vunpack.c.l.b16 %v408
    %v442 = vunpack.c.l.b16 %v409
    %v443 = vunpack.c.l.b16 %v410
    %v444 = vunpack.c.l.b16 %v411
    %v445 = vunpack.c.l.b16 %v412
    %v446 = vunpack.c.l.b16 %v413
    %v447 = vunpack.c.l.b16 %v414
    %v448 = vunpack.c.l.b16 %v415
    %v449 = vunpack.c.l.b16 %v416
    %v450 = vunpack.c.l.b16 %v417
    %v451 = vunpack.c.l.b16 %v418
    %v452 = vunpack.c.l.b16 %v419
    %v453 = vpack.c.b16 %v438, %v437
    %v454 = vpack.c.b16 %v440, %v439
    %v455 = vpack.c.b16 %v442, %v441
    %v456 = vpack.c.b16 %v444, %v443
    %v457 = vpack.c.b16 %v446, %v445
    %v458 = vpack.c.b16 %v448, %v447
    %v459 = vpack.c.b16 %v450, %v449
    %v460 = vpack.c.b16 %v452, %v451
    %469 = vmatpush.bf16.msra.mxu0 %v460
    %470 = vmatpush.bf16.msra.mxu0 %v459
    %471 = vmatpush.bf16.msra.mxu0 %v458
    %472 = vmatpush.bf16.msra.mxu0 %v457
    %473 = vmatpush.bf16.msra.mxu0 %v456
    %474 = vmatpush.bf16.msra.mxu0 %v455
    %475 = vmatpush.bf16.msra.mxu0 %v454
    %476 = vmatpush.bf16.msra.mxu0 %v453
    %477 = vmatmul.bf16.gmra.mxu0 %v396
    %v478 = vpop.f32.mrf.mxu0
    %v479 = vadd.f32 0.0, %v478
    %v480 = vpop.f32.mrf.mxu0
    %v481 = vadd.f32 0.0, %v480
    %482 = vmatmul.bf16.gmra.mxu0 %v397
    %v483 = vpop.f32.mrf.mxu0
    %v484 = vadd.f32 0.0, %v483
    %v485 = vpop.f32.mrf.mxu0
    %v486 = vadd.f32 0.0, %v485
    %487 = vmatmul.bf16.gmra.mxu0 %v398
    %v488 = vpop.f32.mrf.mxu0
    %v489 = vadd.f32 0.0, %v488
    %v490 = vpop.f32.mrf.mxu0
    %v491 = vadd.f32 0.0, %v490
    %492 = vmatmul.bf16.gmra.mxu0 %v399
    %v493 = vpop.f32.mrf.mxu0
    %v494 = vadd.f32 0.0, %v493
    %v495 = vpop.f32.mrf.mxu0
    %v496 = vadd.f32 0.0, %v495
    %497 = vmatmul.bf16.gmra.mxu0 %v400
    %v498 = vpop.f32.mrf.mxu0
    %v499 = vadd.f32 0.0, %v498
    %v500 = vpop.f32.mrf.mxu0
    %v501 = vadd.f32 0.0, %v500
    %502 = vmatmul.bf16.gmra.mxu0 %v401
    %v503 = vpop.f32.mrf.mxu0
    %v504 = vadd.f32 0.0, %v503
    %v505 = vpop.f32.mrf.mxu0
    %v506 = vadd.f32 0.0, %v505
    %507 = vmatmul.bf16.gmra.mxu0 %v402
    %v508 = vpop.f32.mrf.mxu0
    %v509 = vadd.f32 0.0, %v508
    %v510 = vpop.f32.mrf.mxu0
    %v511 = vadd.f32 0.0, %v510
    %512 = vmatmul.bf16.gmra.mxu0 %v403
    %v513 = vpop.f32.mrf.mxu0
    %v514 = vadd.f32 0.0, %v513
    %v515 = vpop.f32.mrf.mxu0
    %v516 = vadd.f32 0.0, %v515
    %517 = vdwg.mxu0
    %v518 = vpack.c.bf16 %v481, %v479
    %v519 = vpack.c.bf16 %v486, %v484
    %v520 = vpack.c.bf16 %v491, %v489
    %v521 = vpack.c.bf16 %v496, %v494
    %v522 = vpack.c.bf16 %v501, %v499
    %v523 = vpack.c.bf16 %v506, %v504
    %v524 = vpack.c.bf16 %v511, %v509
    %v525 = vpack.c.bf16 %v516, %v514
    %v527 = vperm.slane %v420, 0
    %529 = vmatpush.bf16.msra.mxu0 %v525
    %530 = vmatpush.bf16.msra.mxu0 %v524
    %531 = vmatpush.bf16.msra.mxu0 %v523
    %532 = vmatpush.bf16.msra.mxu0 %v522
    %533 = vmatpush.bf16.msra.mxu0 %v521
    %534 = vmatpush.bf16.msra.mxu0 %v520
    %535 = vmatpush.bf16.msra.mxu0 %v519
    %536 = vmatpush.bf16.msra.mxu0 %v518
    %537 = vmatmul.bf16.gmra.mxu0 %v315
    %v538 = vpop.f32.mrf.mxu0
    %v539 = vadd.f32 %v527, %v538
    %v540 = vpop.f32.mrf.mxu0
    %v541 = vadd.f32 %v527, %v540
    %542 = vmatmul.bf16.gmra.mxu0 %v316
    %v543 = vpop.f32.mrf.mxu0
    %v544 = vadd.f32 %v527, %v543
    %v545 = vpop.f32.mrf.mxu0
    %v546 = vadd.f32 %v527, %v545
    %547 = vmatmul.bf16.gmra.mxu0 %v317
    %v548 = vpop.f32.mrf.mxu0
    %v549 = vadd.f32 %v527, %v548
    %v550 = vpop.f32.mrf.mxu0
    %v551 = vadd.f32 %v527, %v550
    %552 = vmatmul.bf16.gmra.mxu0 %v318
    %v553 = vpop.f32.mrf.mxu0
    %v554 = vadd.f32 %v527, %v553
    %v555 = vpop.f32.mrf.mxu0
    %v556 = vadd.f32 %v527, %v555
    %557 = vmatmul.bf16.gmra.mxu0 %v319
    %v558 = vpop.f32.mrf.mxu0
    %v559 = vadd.f32 %v527, %v558
    %v560 = vpop.f32.mrf.mxu0
    %v561 = vadd.f32 %v527, %v560
    %562 = vmatmul.bf16.gmra.mxu0 %v320
    %v563 = vpop.f32.mrf.mxu0
    %v564 = vadd.f32 %v527, %v563
    %v565 = vpop.f32.mrf.mxu0
    %v566 = vadd.f32 %v527, %v565
    %567 = vmatmul.bf16.gmra.mxu0 %v321
    %v568 = vpop.f32.mrf.mxu0
    %v569 = vadd.f32 %v527, %v568
    %v570 = vpop.f32.mrf.mxu0
    %v571 = vadd.f32 %v527, %v570
    %572 = vmatmul.bf16.gmra.mxu0 %v322
    %v573 = vpop.f32.mrf.mxu0
    %v574 = vadd.f32 %v527, %v573
    %v575 = vpop.f32.mrf.mxu0
    %v576 = vadd.f32 %v527, %v575
    %577 = vdwg.mxu0
    %v578 = vadd.f32 %v539, %v380
    %v579 = vadd.f32 %v541, %v381
    %v580 = vadd.f32 %v544, %v382
    %v581 = vadd.f32 %v546, %v383
    %v582 = vadd.f32 %v549, %v384
    %v583 = vadd.f32 %v551, %v385
    %v584 = vadd.f32 %v554, %v386
    %v585 = vadd.f32 %v556, %v387
    %v586 = vadd.f32 %v559, %v388
    %v587 = vadd.f32 %v561, %v389
    %v588 = vadd.f32 %v564, %v390
    %v589 = vadd.f32 %v566, %v391
    %v590 = vadd.f32 %v569, %v392
    %v591 = vadd.f32 %v571, %v393
    %v592 = vadd.f32 %v574, %v394
    %v593 = vadd.f32 %v576, %v395
    %v594 = vtanh.pop %v578
    %v595 = vtanh.pop %v579
    %v596 = vtanh.pop %v580
    %v597 = vtanh.pop %v581
    %v598 = vtanh.pop %v582
    %v599 = vtanh.pop %v583
    %v600 = vtanh.pop %v584
    %v601 = vtanh.pop %v585
    %v602 = vtanh.pop %v586
    %v603 = vtanh.pop %v587
    %v604 = vtanh.pop %v588
    %v605 = vtanh.pop %v589
    %v606 = vtanh.pop %v590
    %v607 = vtanh.pop %v591
    %v608 = vtanh.pop %v592
    %v609 = vtanh.pop %v593
    %v610 = vpack.c.bf16 %v595, %v594
    %v611 = vpack.c.bf16 %v597, %v596
    %v612 = vpack.c.bf16 %v599, %v598
    %v613 = vpack.c.bf16 %v601, %v600
    %v614 = vpack.c.bf16 %v603, %v602
    %v615 = vpack.c.bf16 %v605, %v604
    %v616 = vpack.c.bf16 %v607, %v606
    %v617 = vpack.c.bf16 %v609, %v608
    %s618 = scalar_lea.vmem [#allocation4], 64
    %v619 = vld [vmem:[%s618] sm:$0xf]
    %v620 = vld [vmem:[%s618 + $0x4] sm:$0xf]
    %v621 = vld [vmem:[%s618 + $0x8] sm:$0xf]
    %v622 = vld [vmem:[%s618 + $0xc] sm:$0xf]
    %v623 = vld [vmem:[%s618 + $0x10] sm:$0xf]
    %v624 = vld [vmem:[%s618 + $0x14] sm:$0xf]
    %v625 = vld [vmem:[%s618 + $0x18] sm:$0xf]
    %v626 = vld [vmem:[%s618 + $0x1c] sm:$0xf]
    %v627 = vld [vmem:[%s618 + $0x20] sm:$0xf]
    %v628 = vld [vmem:[%s618 + $0x24] sm:$0xf]
    %v629 = vld [vmem:[%s618 + $0x28] sm:$0xf]
    %v630 = vld [vmem:[%s618 + $0x2c] sm:$0xf]
    %v631 = vld [vmem:[%s618 + $0x30] sm:$0xf]
    %v632 = vld [vmem:[%s618 + $0x34] sm:$0xf]
    %v633 = vld [vmem:[%s618 + $0x38] sm:$0xf]
    %v634 = vld [vmem:[%s618 + $0x3c] sm:$0xf]
    %s635 = scalar_lea.vmem %s5, 1
    %v636 = vld [vmem:[%s635] sm:$0x1]
    %v653 = vunpack.c.l.b16 %v619
    %v654 = vunpack.c.l.b16 %v620
    %v655 = vunpack.c.l.b16 %v621
    %v656 = vunpack.c.l.b16 %v622
    %v657 = vunpack.c.l.b16 %v623
    %v658 = vunpack.c.l.b16 %v624
    %v659 = vunpack.c.l.b16 %v625
    %v660 = vunpack.c.l.b16 %v626
    %v661 = vunpack.c.l.b16 %v627
    %v662 = vunpack.c.l.b16 %v628
    %v663 = vunpack.c.l.b16 %v629
    %v664 = vunpack.c.l.b16 %v630
    %v665 = vunpack.c.l.b16 %v631
    %v666 = vunpack.c.l.b16 %v632
    %v667 = vunpack.c.l.b16 %v633
    %v668 = vunpack.c.l.b16 %v634
    %v669 = vpack.c.b16 %v654, %v653
    %v670 = vpack.c.b16 %v656, %v655
    %v671 = vpack.c.b16 %v658, %v657
    %v672 = vpack.c.b16 %v660, %v659
    %v673 = vpack.c.b16 %v662, %v661
    %v674 = vpack.c.b16 %v664, %v663
    %v675 = vpack.c.b16 %v666, %v665
    %v676 = vpack.c.b16 %v668, %v667
    %685 = vmatpush.bf16.msra.mxu0 %v676
    %686 = vmatpush.bf16.msra.mxu0 %v675
    %687 = vmatpush.bf16.msra.mxu0 %v674
    %688 = vmatpush.bf16.msra.mxu0 %v673
    %689 = vmatpush.bf16.msra.mxu0 %v672
    %690 = vmatpush.bf16.msra.mxu0 %v671
    %691 = vmatpush.bf16.msra.mxu0 %v670
    %692 = vmatpush.bf16.msra.mxu0 %v669
    %693 = vmatmul.bf16.gmra.mxu0 %v610
    %v694 = vpop.f32.mrf.mxu0
    %v695 = vadd.f32 0.0, %v694
    %v696 = vpop.f32.mrf.mxu0
    %v697 = vadd.f32 0.0, %v696
    %698 = vmatmul.bf16.gmra.mxu0 %v611
    %v699 = vpop.f32.mrf.mxu0
    %v700 = vadd.f32 0.0, %v699
    %v701 = vpop.f32.mrf.mxu0
    %v702 = vadd.f32 0.0, %v701
    %703 = vmatmul.bf16.gmra.mxu0 %v612
    %v704 = vpop.f32.mrf.mxu0
    %v705 = vadd.f32 0.0, %v704
    %v706 = vpop.f32.mrf.mxu0
    %v707 = vadd.f32 0.0, %v706
    %708 = vmatmul.bf16.gmra.mxu0 %v613
    %v709 = vpop.f32.mrf.mxu0
    %v710 = vadd.f32 0.0, %v709
    %v711 = vpop.f32.mrf.mxu0
    %v712 = vadd.f32 0.0, %v711
    %713 = vmatmul.bf16.gmra.mxu0 %v614
    %v714 = vpop.f32.mrf.mxu0
    %v715 = vadd.f32 0.0, %v714
    %v716 = vpop.f32.mrf.mxu0
    %v717 = vadd.f32 0.0, %v716
    %718 = vmatmul.bf16.gmra.mxu0 %v615
    %v719 = vpop.f32.mrf.mxu0
    %v720 = vadd.f32 0.0, %v719
    %v721 = vpop.f32.mrf.mxu0
    %v722 = vadd.f32 0.0, %v721
    %723 = vmatmul.bf16.gmra.mxu0 %v616
    %v724 = vpop.f32.mrf.mxu0
    %v725 = vadd.f32 0.0, %v724
    %v726 = vpop.f32.mrf.mxu0
    %v727 = vadd.f32 0.0, %v726
    %728 = vmatmul.bf16.gmra.mxu0 %v617
    %v729 = vpop.f32.mrf.mxu0
    %v730 = vadd.f32 0.0, %v729
    %v731 = vpop.f32.mrf.mxu0
    %v732 = vadd.f32 0.0, %v731
    %733 = vdwg.mxu0
    %v734 = vpack.c.bf16 %v697, %v695
    %v735 = vpack.c.bf16 %v702, %v700
    %v736 = vpack.c.bf16 %v707, %v705
    %v737 = vpack.c.bf16 %v712, %v710
    %v738 = vpack.c.bf16 %v717, %v715
    %v739 = vpack.c.bf16 %v722, %v720
    %v740 = vpack.c.bf16 %v727, %v725
    %v741 = vpack.c.bf16 %v732, %v730
    %v743 = vperm.slane %v636, 0
    %745 = vmatpush.bf16.msra.mxu0 %v741
    %746 = vmatpush.bf16.msra.mxu0 %v740
    %747 = vmatpush.bf16.msra.mxu0 %v739
    %748 = vmatpush.bf16.msra.mxu0 %v738
    %749 = vmatpush.bf16.msra.mxu0 %v737
    %750 = vmatpush.bf16.msra.mxu0 %v736
    %751 = vmatpush.bf16.msra.mxu0 %v735
    %752 = vmatpush.bf16.msra.mxu0 %v734
    %753 = vmatmul.bf16.gmra.mxu0 %v315
    %v754 = vpop.f32.mrf.mxu0
    %v755 = vadd.f32 %v743, %v754
    %v756 = vpop.f32.mrf.mxu0
    %v757 = vadd.f32 %v743, %v756
    %758 = vmatmul.bf16.gmra.mxu0 %v316
    %v759 = vpop.f32.mrf.mxu0
    %v760 = vadd.f32 %v743, %v759
    %v761 = vpop.f32.mrf.mxu0
    %v762 = vadd.f32 %v743, %v761
    %763 = vmatmul.bf16.gmra.mxu0 %v317
    %v764 = vpop.f32.mrf.mxu0
    %v765 = vadd.f32 %v743, %v764
    %v766 = vpop.f32.mrf.mxu0
    %v767 = vadd.f32 %v743, %v766
    %768 = vmatmul.bf16.gmra.mxu0 %v318
    %v769 = vpop.f32.mrf.mxu0
    %v770 = vadd.f32 %v743, %v769
    %v771 = vpop.f32.mrf.mxu0
    %v772 = vadd.f32 %v743, %v771
    %773 = vmatmul.bf16.gmra.mxu0 %v319
    %v774 = vpop.f32.mrf.mxu0
    %v775 = vadd.f32 %v743, %v774
    %v776 = vpop.f32.mrf.mxu0
    %v777 = vadd.f32 %v743, %v776
    %778 = vmatmul.bf16.gmra.mxu0 %v320
    %v779 = vpop.f32.mrf.mxu0
    %v780 = vadd.f32 %v743, %v779
    %v781 = vpop.f32.mrf.mxu0
    %v782 = vadd.f32 %v743, %v781
    %783 = vmatmul.bf16.gmra.mxu0 %v321
    %v784 = vpop.f32.mrf.mxu0
    %v785 = vadd.f32 %v743, %v784
    %v786 = vpop.f32.mrf.mxu0
    %v787 = vadd.f32 %v743, %v786
    %788 = vmatmul.bf16.gmra.mxu0 %v322
    %v789 = vpop.f32.mrf.mxu0
    %v790 = vadd.f32 %v743, %v789
    %v791 = vpop.f32.mrf.mxu0
    %v792 = vadd.f32 %v743, %v791
    %793 = vdwg.mxu0
    %v794 = vadd.f32 %v755, %v594
    %v795 = vadd.f32 %v757, %v595
    %v796 = vadd.f32 %v760, %v596
    %v797 = vadd.f32 %v762, %v597
    %v798 = vadd.f32 %v765, %v598
    %v799 = vadd.f32 %v767, %v599
    %v800 = vadd.f32 %v770, %v600
    %v801 = vadd.f32 %v772, %v601
    %v802 = vadd.f32 %v775, %v602
    %v803 = vadd.f32 %v777, %v603
    %v804 = vadd.f32 %v780, %v604
    %v805 = vadd.f32 %v782, %v605
    %v806 = vadd.f32 %v785, %v606
    %v807 = vadd.f32 %v787, %v607
    %v808 = vadd.f32 %v790, %v608
    %v809 = vadd.f32 %v792, %v609
    %v810 = vtanh.pop %v794
    %v811 = vtanh.pop %v795
    %v812 = vtanh.pop %v796
    %v813 = vtanh.pop %v797
    %v814 = vtanh.pop %v798
    %v815 = vtanh.pop %v799
    %v816 = vtanh.pop %v800
    %v817 = vtanh.pop %v801
    %v818 = vtanh.pop %v802
    %v819 = vtanh.pop %v803
    %v820 = vtanh.pop %v804
    %v821 = vtanh.pop %v805
    %v822 = vtanh.pop %v806
    %v823 = vtanh.pop %v807
    %v824 = vtanh.pop %v808
    %v825 = vtanh.pop %v809
    %v826 = vpack.c.bf16 %v811, %v810
    %v827 = vpack.c.bf16 %v813, %v812
    %v828 = vpack.c.bf16 %v815, %v814
    %v829 = vpack.c.bf16 %v817, %v816
    %v830 = vpack.c.bf16 %v819, %v818
    %v831 = vpack.c.bf16 %v821, %v820
    %v832 = vpack.c.bf16 %v823, %v822
    %v833 = vpack.c.bf16 %v825, %v824
    %v834 = vld [vmem:[#allocation6] sm:$0xf]
    %v835 = vld [vmem:[#allocation6 + $0x4] sm:$0xf]
    %v836 = vld [vmem:[#allocation6 + $0x8] sm:$0xf]
    %v837 = vld [vmem:[#allocation6 + $0xc] sm:$0xf]
    %v838 = vld [vmem:[#allocation6 + $0x10] sm:$0xf]
    %v839 = vld [vmem:[#allocation6 + $0x14] sm:$0xf]
    %v840 = vld [vmem:[#allocation6 + $0x18] sm:$0xf]
    %v841 = vld [vmem:[#allocation6 + $0x1c] sm:$0xf]
    %v842 = vld [vmem:[#allocation6 + $0x20] sm:$0xf]
    %v843 = vld [vmem:[#allocation6 + $0x24] sm:$0xf]
    %v844 = vld [vmem:[#allocation6 + $0x28] sm:$0xf]
    %v845 = vld [vmem:[#allocation6 + $0x2c] sm:$0xf]
    %v846 = vld [vmem:[#allocation6 + $0x30] sm:$0xf]
    %v847 = vld [vmem:[#allocation6 + $0x34] sm:$0xf]
    %v848 = vld [vmem:[#allocation6 + $0x38] sm:$0xf]
    %v849 = vld [vmem:[#allocation6 + $0x3c] sm:$0xf]
    %v850 = vld [vmem:[%s7] sm:$0x1]
    %v867 = vunpack.c.l.b16 %v834
    %v868 = vunpack.c.l.b16 %v835
    %v869 = vunpack.c.l.b16 %v836
    %v870 = vunpack.c.l.b16 %v837
    %v871 = vunpack.c.l.b16 %v838
    %v872 = vunpack.c.l.b16 %v839
    %v873 = vunpack.c.l.b16 %v840
    %v874 = vunpack.c.l.b16 %v841
    %v875 = vunpack.c.l.b16 %v842
    %v876 = vunpack.c.l.b16 %v843
    %v877 = vunpack.c.l.b16 %v844
    %v878 = vunpack.c.l.b16 %v845
    %v879 = vunpack.c.l.b16 %v846
    %v880 = vunpack.c.l.b16 %v847
    %v881 = vunpack.c.l.b16 %v848
    %v882 = vunpack.c.l.b16 %v849
    %v883 = vpack.c.b16 %v868, %v867
    %v884 = vpack.c.b16 %v870, %v869
    %v885 = vpack.c.b16 %v872, %v871
    %v886 = vpack.c.b16 %v874, %v873
    %v887 = vpack.c.b16 %v876, %v875
    %v888 = vpack.c.b16 %v878, %v877
    %v889 = vpack.c.b16 %v880, %v879
    %v890 = vpack.c.b16 %v882, %v881
    %899 = vmatpush.bf16.msra.mxu0 %v890
    %900 = vmatpush.bf16.msra.mxu0 %v889
    %901 = vmatpush.bf16.msra.mxu0 %v888
    %902 = vmatpush.bf16.msra.mxu0 %v887
    %903 = vmatpush.bf16.msra.mxu0 %v886
    %904 = vmatpush.bf16.msra.mxu0 %v885
    %905 = vmatpush.bf16.msra.mxu0 %v884
    %906 = vmatpush.bf16.msra.mxu0 %v883
    %907 = vmatmul.bf16.gmra.mxu0 %v826
    %v908 = vpop.f32.mrf.mxu0
    %v909 = vadd.f32 0.0, %v908
    %v910 = vpop.f32.mrf.mxu0
    %v911 = vadd.f32 0.0, %v910
    %912 = vmatmul.bf16.gmra.mxu0 %v827
    %v913 = vpop.f32.mrf.mxu0
    %v914 = vadd.f32 0.0, %v913
    %v915 = vpop.f32.mrf.mxu0
    %v916 = vadd.f32 0.0, %v915
    %917 = vmatmul.bf16.gmra.mxu0 %v828
    %v918 = vpop.f32.mrf.mxu0
    %v919 = vadd.f32 0.0, %v918
    %v920 = vpop.f32.mrf.mxu0
    %v921 = vadd.f32 0.0, %v920
    %922 = vmatmul.bf16.gmra.mxu0 %v829
    %v923 = vpop.f32.mrf.mxu0
    %v924 = vadd.f32 0.0, %v923
    %v925 = vpop.f32.mrf.mxu0
    %v926 = vadd.f32 0.0, %v925
    %927 = vmatmul.bf16.gmra.mxu0 %v830
    %v928 = vpop.f32.mrf.mxu0
    %v929 = vadd.f32 0.0, %v928
    %v930 = vpop.f32.mrf.mxu0
    %v931 = vadd.f32 0.0, %v930
    %932 = vmatmul.bf16.gmra.mxu0 %v831
    %v933 = vpop.f32.mrf.mxu0
    %v934 = vadd.f32 0.0, %v933
    %v935 = vpop.f32.mrf.mxu0
    %v936 = vadd.f32 0.0, %v935
    %937 = vmatmul.bf16.gmra.mxu0 %v832
    %v938 = vpop.f32.mrf.mxu0
    %v939 = vadd.f32 0.0, %v938
    %v940 = vpop.f32.mrf.mxu0
    %v941 = vadd.f32 0.0, %v940
    %942 = vmatmul.bf16.gmra.mxu0 %v833
    %v943 = vpop.f32.mrf.mxu0
    %v944 = vadd.f32 0.0, %v943
    %v945 = vpop.f32.mrf.mxu0
    %v946 = vadd.f32 0.0, %v945
    %947 = vdwg.mxu0
    %v948 = vpack.c.bf16 %v911, %v909
    %v949 = vpack.c.bf16 %v916, %v914
    %v950 = vpack.c.bf16 %v921, %v919
    %v951 = vpack.c.bf16 %v926, %v924
    %v952 = vpack.c.bf16 %v931, %v929
    %v953 = vpack.c.bf16 %v936, %v934
    %v954 = vpack.c.bf16 %v941, %v939
    %v955 = vpack.c.bf16 %v946, %v944
    %v957 = vperm.slane %v850, 0
    %959 = vmatpush.bf16.msra.mxu0 %v955
    %960 = vmatpush.bf16.msra.mxu0 %v954
    %961 = vmatpush.bf16.msra.mxu0 %v953
    %962 = vmatpush.bf16.msra.mxu0 %v952
    %963 = vmatpush.bf16.msra.mxu0 %v951
    %964 = vmatpush.bf16.msra.mxu0 %v950
    %965 = vmatpush.bf16.msra.mxu0 %v949
    %966 = vmatpush.bf16.msra.mxu0 %v948
    %967 = vmatmul.bf16.gmra.mxu0 %v315
    %v968 = vpop.f32.mrf.mxu0
    %v969 = vadd.f32 %v957, %v968
    %v970 = vpop.f32.mrf.mxu0
    %v971 = vadd.f32 %v957, %v970
    %972 = vmatmul.bf16.gmra.mxu0 %v316
    %v973 = vpop.f32.mrf.mxu0
    %v974 = vadd.f32 %v957, %v973
    %v975 = vpop.f32.mrf.mxu0
    %v976 = vadd.f32 %v957, %v975
    %977 = vmatmul.bf16.gmra.mxu0 %v317
    %v978 = vpop.f32.mrf.mxu0
    %v979 = vadd.f32 %v957, %v978
    %v980 = vpop.f32.mrf.mxu0
    %v981 = vadd.f32 %v957, %v980
    %982 = vmatmul.bf16.gmra.mxu0 %v318
    %v983 = vpop.f32.mrf.mxu0
    %v984 = vadd.f32 %v957, %v983
    %v985 = vpop.f32.mrf.mxu0
    %v986 = vadd.f32 %v957, %v985
    %987 = vmatmul.bf16.gmra.mxu0 %v319
    %v988 = vpop.f32.mrf.mxu0
    %v989 = vadd.f32 %v957, %v988
    %v990 = vpop.f32.mrf.mxu0
    %v991 = vadd.f32 %v957, %v990
    %992 = vmatmul.bf16.gmra.mxu0 %v320
    %v993 = vpop.f32.mrf.mxu0
    %v994 = vadd.f32 %v957, %v993
    %v995 = vpop.f32.mrf.mxu0
    %v996 = vadd.f32 %v957, %v995
    %997 = vmatmul.bf16.gmra.mxu0 %v321
    %v998 = vpop.f32.mrf.mxu0
    %v999 = vadd.f32 %v957, %v998
    %v1000 = vpop.f32.mrf.mxu0
    %v1001 = vadd.f32 %v957, %v1000
    %1002 = vmatmul.bf16.gmra.mxu0 %v322
    %v1003 = vpop.f32.mrf.mxu0
    %v1004 = vadd.f32 %v957, %v1003
    %v1005 = vpop.f32.mrf.mxu0
    %v1006 = vadd.f32 %v957, %v1005
    %1007 = vdwg.mxu0
    %1008 = vst [vmem:[%s8] sm:$0xff] %v810
    %1009 = vst [vmem:[%s8 + $0x8] sm:$0xff] %v811
    %1010 = vst [vmem:[%s8 + $0x10] sm:$0xff] %v812
    %1011 = vst [vmem:[%s8 + $0x18] sm:$0xff] %v813
    %1012 = vst [vmem:[%s8 + $0x20] sm:$0xff] %v814
    %1013 = vst [vmem:[%s8 + $0x28] sm:$0xff] %v815
    %1014 = vst [vmem:[%s8 + $0x30] sm:$0xff] %v816
    %1015 = vst [vmem:[%s8 + $0x38] sm:$0xff] %v817
    %1016 = vst [vmem:[%s8 + $0x40] sm:$0xff] %v818
    %1017 = vst [vmem:[%s8 + $0x48] sm:$0xff] %v819
    %1018 = vst [vmem:[%s8 + $0x50] sm:$0xff] %v820
    %1019 = vst [vmem:[%s8 + $0x58] sm:$0xff] %v821
    %1020 = vst [vmem:[%s8 + $0x60] sm:$0xff] %v822
    %1021 = vst [vmem:[%s8 + $0x68] sm:$0xff] %v823
    %1022 = vst [vmem:[%s8 + $0x70] sm:$0xff] %v824
    %1023 = vst [vmem:[%s8 + $0x78] sm:$0xff] %v825
    %1024 = vst [vmem:[%s9] sm:$0xff] %v969
    %1025 = vst [vmem:[%s9 + $0x8] sm:$0xff] %v971
    %1026 = vst [vmem:[%s9 + $0x10] sm:$0xff] %v974
    %1027 = vst [vmem:[%s9 + $0x18] sm:$0xff] %v976
    %1028 = vst [vmem:[%s9 + $0x20] sm:$0xff] %v979
    %1029 = vst [vmem:[%s9 + $0x28] sm:$0xff] %v981
    %1030 = vst [vmem:[%s9 + $0x30] sm:$0xff] %v984
    %1031 = vst [vmem:[%s9 + $0x38] sm:$0xff] %v986
    %1032 = vst [vmem:[%s9 + $0x40] sm:$0xff] %v989
    %1033 = vst [vmem:[%s9 + $0x48] sm:$0xff] %v991
    %1034 = vst [vmem:[%s9 + $0x50] sm:$0xff] %v994
    %1035 = vst [vmem:[%s9 + $0x58] sm:$0xff] %v996
    %1036 = vst [vmem:[%s9 + $0x60] sm:$0xff] %v999
    %1037 = vst [vmem:[%s9 + $0x68] sm:$0xff] %v1001
    %1038 = vst [vmem:[%s9 + $0x70] sm:$0xff] %v1004
    %1039 = vst [vmem:[%s9 + $0x78] sm:$0xff] %v1006
    // Predicated region
    $region46: #{gbottleneck_forward.1} parent=1 // pred_check
      _
    $region47: #{gbottleneck_forward.1} parent=1 // pred_check_branch
      %1041 = sbr.rel (0) target = $region49
    $region48: #{gbottleneck_forward.1} parent=1 // pred_region
      _
    $region49: #{gbottleneck_forward.1} parent=1 // pred_fallthru
      _
    // Predicated region
    $region50: #{gbottleneck_forward.1} parent=1 // pred_check
      _
    $region51: #{gbottleneck_forward.1} parent=1 // pred_check_branch
      %1043 = sbr.rel (0) target = $region53
    $region52: #{gbottleneck_forward.1} parent=1 // pred_region
      _
    $region53: #{gbottleneck_forward.1} parent=1 // pred_fallthru
      _
    // Predicated region
    $region54: #{gbottleneck_forward.1} parent=1 // pred_check
      _
    $region55: #{gbottleneck_forward.1} parent=1 // pred_check_branch
      %1045 = sbr.rel (0) target = $region57
    $region56: #{gbottleneck_forward.1} parent=1 // pred_region
      _
    $region57: #{gbottleneck_forward.1} parent=1 // pred_fallthru
      _
    // Predicated region
    $region58: #{gbottleneck_forward.1} parent=1 // pred_check
      _
    $region59: #{gbottleneck_forward.1} parent=1 // pred_check_branch
      %1047 = sbr.rel (0) target = $region61
    $region60: #{gbottleneck_forward.1} parent=1 // pred_region
      _
    $region61: #{gbottleneck_forward.1} parent=1 // pred_fallthru
      _
    %1048 = vsyncpa [#allocation3], 1
    %1049 = vsyncpa [#allocation5], 1

</llo_original>
